<compile_context>
chip_gen: v6e
topology: v6e:2x2x1
jax: 0.10.0
libtpu: 0.0.40
codegen_flags: <defaults>
</compile_context>

<pallas_src>
import functools
import math

import jax
import jax.numpy as jnp
from jax import lax
from jax.experimental import pallas as pl
from jax.experimental.pallas import tpu as pltpu

_MASK_FILL = -1e32
_VMEM_LIMIT = 64 * 1024 * 1024


# --------------------------- fused QKV projection ---------------------------

def _qkv_proj_kernel(xq_ref, xk_ref, xv_ref,
                     wq_ref, bq_ref, wk_ref, bk_ref, wv_ref, bv_ref,
                     q_ref, k_ref, v_ref):
    def proj(x_ref, w_ref, b_ref):
        # y = x @ W_t + b ; bf16 MXU inputs, f32 accumulation, f32 bias add.
        y = lax.dot_general(x_ref[...], w_ref[...],
                            (((1,), (0,)), ((), ())),
                            preferred_element_type=jnp.float32)
        return y + b_ref[...]

    q_ref[...] = proj(xq_ref, wq_ref, bq_ref).astype(q_ref.dtype)
    k_ref[...] = proj(xk_ref, wk_ref, bk_ref).astype(k_ref.dtype)
    v_ref[...] = proj(xv_ref, wv_ref, bv_ref).astype(v_ref.dtype)


def qkv_projection(xq, xk, xv, wq_t, bq, wk_t, bk, wv_t, bv, *, tile_n=256):
    """xq/xk/xv: (N, D_in) compute-dtype; w*_t: (D_in, D_out) pre-transposed
    compute-dtype (VMEM-resident, single-buffered); b*: (D_out,) f32."""
    N, d_in = xq.shape
    d_out = wq_t.shape[1]
    tn = min(tile_n, N)
    grid = (pl.cdiv(N, tn),)

    row_in = pl.BlockSpec((tn, d_in), lambda i: (i, 0))
    row_out = pl.BlockSpec((tn, d_out), lambda i: (i, 0))
    w_spec = pl.BlockSpec((d_in, d_out), lambda i: (0, 0),
                          pipeline_mode=pl.Buffered(1))
    b_spec = pl.BlockSpec((1, d_out), lambda i: (0, 0),
                          pipeline_mode=pl.Buffered(1))

    out_sds = jax.ShapeDtypeStruct((N, d_out), xq.dtype)
    return pl.pallas_call(
        _qkv_proj_kernel,
        out_shape=(out_sds, out_sds, out_sds),
        grid_spec=pltpu.PrefetchScalarGridSpec(
            num_scalar_prefetch=0,
            grid=grid,
            in_specs=[row_in, row_in, row_in,
                      w_spec, b_spec, w_spec, b_spec, w_spec, b_spec],
            out_specs=[row_out, row_out, row_out],
        ),
        compiler_params=pltpu.CompilerParams(
            dimension_semantics=("parallel",),
            vmem_limit_bytes=_VMEM_LIMIT),
    )(xq, xk, xv,
      wq_t, bq.reshape(1, d_out).astype(jnp.float32),
      wk_t, bk.reshape(1, d_out).astype(jnp.float32),
      wv_t, bv.reshape(1, d_out).astype(jnp.float32))


# --------------------------- output projection -------------------------------

def _linear_kernel(x_ref, w_ref, b_ref, o_ref):
    y = lax.dot_general(x_ref[...], w_ref[...],
                        (((1,), (0,)), ((), ())),
                        preferred_element_type=jnp.float32)
    o_ref[...] = (y + b_ref[...]).astype(o_ref.dtype)


def linear(x, w_t, b, *, tile_n=256, out_dtype=jnp.float32):
    """x: (N, D_in) compute-dtype; w_t: (D_in, D_out) pre-transposed; b: (D_out,)."""
    N, d_in = x.shape
    d_out = w_t.shape[1]
    tn = min(tile_n, N)
    grid = (pl.cdiv(N, tn),)
    return pl.pallas_call(
        _linear_kernel,
        out_shape=jax.ShapeDtypeStruct((N, d_out), out_dtype),
        grid_spec=pltpu.PrefetchScalarGridSpec(
            num_scalar_prefetch=0,
            grid=grid,
            in_specs=[pl.BlockSpec((tn, d_in), lambda i: (i, 0)),
                      pl.BlockSpec((d_in, d_out), lambda i: (0, 0),
                                   pipeline_mode=pl.Buffered(1)),
                      pl.BlockSpec((1, d_out), lambda i: (0, 0),
                                   pipeline_mode=pl.Buffered(1))],
            out_specs=pl.BlockSpec((tn, d_out), lambda i: (i, 0)),
        ),
        compiler_params=pltpu.CompilerParams(
            dimension_semantics=("parallel",),
            vmem_limit_bytes=_VMEM_LIMIT),
    )(x, w_t, b.reshape(1, d_out).astype(jnp.float32))


# --------------------------- attention core ----------------------------------

def _attention_kernel(q_ref, k_ref, v_ref, mask_ref, o_ref, *, zero_pad):
    # q: (tq, d_k), k/v: (S, d_k).  The 1/sqrt(d_k) scale is already folded
    # into the q projection weights, so scores are just q @ k^T.
    q = q_ref[0]
    k = k_ref[0]
    v = v_ref[0]

    s = lax.dot_general(q, k, (((1,), (1,)), ((), ())),
                        preferred_element_type=jnp.float32)      # (tq, S) f32
    s = jnp.where(mask_ref[...] == 0, _MASK_FILL, s)             # masked_fill

    # Numerically stable softmax; normalization deferred to the context.
    m = jnp.max(s, axis=-1, keepdims=True)
    p = jnp.exp(s - m)                                           # unnormalized
    l = jnp.sum(p, axis=-1, keepdims=True)                       # (tq, 1) f32

    ctx = lax.dot_general(p.astype(v.dtype), v, (((1,), (0,)), ((), ())),
                          preferred_element_type=jnp.float32)    # (tq, d_k) f32
    ctx = ctx * pl.reciprocal(l, approx=True)

    if zero_pad:
        # PyTorch: first query row of the probs -> 0  <=>  first ctx row -> 0.
        tq = ctx.shape[0]
        row = lax.broadcasted_iota(jnp.int32, ctx.shape, 0) + pl.program_id(1) * tq
        ctx = jnp.where(row == 0, 0.0, ctx)

    # TODO(synk): attention-prob dropout omitted (inference / eval path).
    o_ref[0] = ctx.astype(o_ref.dtype)


def attention_core(q, k, v, mask, *, zero_pad, tile_q=128):
    """q/k/v: (B*H, S, d_k) compute-dtype; mask: (S, S) int32 (nonzero = attend)."""
    BH, S, dk = q.shape
    tq = min(tile_q, S)
    grid = (BH, pl.cdiv(S, tq))
    kernel = functools.partial(_attention_kernel, zero_pad=zero_pad)

    q_spec = pl.BlockSpec((1, tq, dk), lambda bh, qi: (bh, qi, 0))
    kv_spec = pl.BlockSpec((1, S, dk), lambda bh, qi: (bh, 0, 0))
    m_spec = pl.BlockSpec((tq, S), lambda bh, qi: (qi, 0))

    return pl.pallas_call(
        kernel,
        out_shape=jax.ShapeDtypeStruct((BH, S, dk), q.dtype),
        grid_spec=pltpu.PrefetchScalarGridSpec(
            num_scalar_prefetch=0,
            grid=grid,
            in_specs=[q_spec, kv_spec, kv_spec, m_spec],
            out_specs=q_spec,
        ),
        compiler_params=pltpu.CompilerParams(
            dimension_semantics=("parallel", "parallel"),
            vmem_limit_bytes=_VMEM_LIMIT),
    )(q, k, v, mask)


# --------------------------- full module forward -----------------------------

def multi_head_attention_forward(q_in, k_in, v_in, mask, params, *,
                                 n_heads, kq_same, zero_pad,
                                 compute_dtype=jnp.bfloat16):
    """Pallas forward of SimpleKT MultiHeadAttention.

    q_in/k_in/v_in: (B, S, d_model) f32.  mask: (S, S), nonzero = attend.
    params: PyTorch-layout weights/biases (w: (out, in), b: (out,)).
    """
    B, S, D = q_in.shape
    d_k = D // n_heads
    N = B * S
    scale = 1.0 / math.sqrt(d_k)
    cd = compute_dtype

    wk, bk = params["k_w"], params["k_b"]
    wv, bv = params["v_w"], params["v_b"]
    wo, bo = params["out_w"], params["out_b"]
    wq, bq = (wk, bk) if kq_same else (params["q_w"], params["q_b"])

    # One-time wrapper-side preprocessing: fold softmax scale into the q
    # projection, pre-transpose all Linear weights to (D_in, D_out), cast
    # MXU inputs to the compute dtype (bf16).
    wq_t = (wq * scale).T.astype(cd)
    bq_s = bq * scale
    wk_t = wk.T.astype(cd)
    wv_t = wv.T.astype(cd)
    wo_t = wo.T.astype(cd)

    xq = q_in.reshape(N, D).astype(cd)
    xk = k_in.reshape(N, D).astype(cd)
    xv = v_in.reshape(N, D).astype(cd)

    q_p, k_p, v_p = qkv_projection(xq, xk, xv, wq_t, bq_s, wk_t, bk, wv_t, bv)

    def split_heads(x):  # (N, D) -> (B*H, S, d_k)   (XLA-side, on bf16 data)
        return (x.reshape(B, S, n_heads, d_k).transpose(0, 2, 1, 3)
                 .reshape(B * n_heads, S, d_k))

    ctx = attention_core(split_heads(q_p), split_heads(k_p), split_heads(v_p),
                         mask.astype(jnp.int32), zero_pad=zero_pad)

    concat = (ctx.reshape(B, n_heads, S, d_k).transpose(0, 2, 1, 3)
                 .reshape(N, D).astype(cd))
    out = linear(concat, wo_t, bo, out_dtype=jnp.float32)
    return out.reshape(B, S, D)


# --------------------------- pure-JAX reference -------------------------------

def reference_forward(q_in, k_in, v_in, mask, params, *,
                      n_heads, kq_same, zero_pad, matmul_dtype=jnp.float32):
    """Reference with PyTorch semantics; matmul_dtype lets it mirror the
    kernel's bf16-at-MXU-inputs numerics (f32 accumulation throughout)."""
    B, S, D = q_in.shape
    d_k = D // n_heads
    scale = 1.0 / math.sqrt(d_k)
    dt = matmul_dtype

    def lin(x, w_t, b):
        y = jnp.dot(x.astype(dt), w_t.astype(dt),
                    preferred_element_type=jnp.float32)
        return y + b

    wk, bk = params["k_w"], params["k_b"]
    wv, bv = params["v_w"], params["v_b"]
    wo, bo = params["out_w"], params["out_b"]
    wq, bq = (wk, bk) if kq_same else (params["q_w"], params["q_b"])

    def heads(x):
        return x.reshape(B, S, n_heads, d_k).transpose(0, 2, 1, 3)

    q = heads(lin(q_in, (wq * scale).T, bq * scale))   # scale folded, as in kernel
    k = heads(lin(k_in, wk.T, bk))
    v = heads(lin(v_in, wv.T, bv))

    scores = jnp.einsum("bhqd,bhkd->bhqk", q.astype(dt), k.astype(dt),
                        preferred_element_type=jnp.float32)
    scores = jnp.where(mask[None, None, :, :] == 0, _MASK_FILL, scores)
    probs = jax.nn.softmax(scores, axis=-1)
    if zero_pad:
        probs = probs.at[:, :, 0, :].set(0.0)
    ctx = jnp.einsum("bhqk,bhkd->bhqd", probs.astype(dt), v.astype(dt),
                     preferred_element_type=jnp.float32)
    concat = ctx.transpose(0, 2, 1, 3).reshape(B, S, D)
    return lin(concat, wo.T, bo).reshape(B, S, D)


# --------------------------- harness ------------------------------------------

if __name__ == "__main__":
    d_model = 32
    n_heads = 4
    B, S = 2, 8
    kq_same = True
    zero_pad = True

    key = jax.random.PRNGKey(0)
    ks = jax.random.split(key, 12)

    def xavier(k, fan_out, fan_in):
        bound = math.sqrt(6.0 / (fan_in + fan_out))
        return jax.random.uniform(k, (fan_out, fan_in), jnp.float32,
                                  minval=-bound, maxval=bound)

    params = {
        "k_w": xavier(ks[0], d_model, d_model),
        "k_b": 0.1 * jax.random.normal(ks[1], (d_model,), jnp.float32),
        "v_w": xavier(ks[2], d_model, d_model),
        "v_b": 0.1 * jax.random.normal(ks[3], (d_model,), jnp.float32),
        "q_w": xavier(ks[4], d_model, d_model),
        "q_b": 0.1 * jax.random.normal(ks[5], (d_model,), jnp.float32),
        "out_w": xavier(ks[6], d_model, d_model),
        "out_b": 0.1 * jax.random.normal(ks[7], (d_model,), jnp.float32),
    }

    x_q = jax.random.normal(ks[8], (B, S, d_model), jnp.float32)
    x_k = jax.random.normal(ks[9], (B, S, d_model), jnp.float32)
    x_v = jax.random.normal(ks[10], (B, S, d_model), jnp.float32)

    # causal mask: attend to positions <= current (nonzero = keep)
    mask = jnp.tril(jnp.ones((S, S), dtype=jnp.int32))

    out = multi_head_attention_forward(
        x_q, x_k, x_v, mask, params,
        n_heads=n_heads, kq_same=kq_same, zero_pad=zero_pad)
    jax.block_until_ready(out)
    assert out.shape == (B, S, d_model)

    # Reference mirroring the kernel's bf16-at-MXU-inputs numerics (tight check)
    ref_bf16 = reference_forward(
        x_q, x_k, x_v, mask, params,
        n_heads=n_heads, kq_same=kq_same, zero_pad=zero_pad,
        matmul_dtype=jnp.bfloat16)
    err_bf16 = float(jnp.max(jnp.abs(out - ref_bf16)))
    assert jnp.allclose(out, ref_bf16, atol=5e-2, rtol=5e-2), (
        f"mismatch vs bf16-matched reference: max abs err {err_bf16}")

    # Full-f32 PyTorch-semantics reference (loose sanity bound over bf16 quantization)
    ref_f32 = reference_forward(
        x_q, x_k, x_v, mask, params,
        n_heads=n_heads, kq_same=kq_same, zero_pad=zero_pad,
        matmul_dtype=jnp.float32)
    err_f32 = float(jnp.max(jnp.abs(out - ref_f32)))
    assert jnp.allclose(out, ref_f32, atol=1.5e-1, rtol=1.5e-1), (
        f"mismatch vs f32 reference: max abs err {err_f32}")

    print("KERNEL_OK")
</pallas_src>

<mosaic_0001>
module attributes {stable_mosaic.version = 11 : i64} {
  func.func @_qkv_proj_kernel(%arg0: i32, %arg1: memref<16x32xbf16, #tpu.memory_space<vmem>>, %arg2: memref<16x32xbf16, #tpu.memory_space<vmem>>, %arg3: memref<16x32xbf16, #tpu.memory_space<vmem>>, %arg4: memref<32x32xbf16, #tpu.memory_space<vmem>>, %arg5: memref<1x32xf32, #tpu.memory_space<vmem>>, %arg6: memref<32x32xbf16, #tpu.memory_space<vmem>>, %arg7: memref<1x32xf32, #tpu.memory_space<vmem>>, %arg8: memref<32x32xbf16, #tpu.memory_space<vmem>>, %arg9: memref<1x32xf32, #tpu.memory_space<vmem>>, %arg10: memref<16x32xbf16, #tpu.memory_space<vmem>>, %arg11: memref<16x32xbf16, #tpu.memory_space<vmem>>, %arg12: memref<16x32xbf16, #tpu.memory_space<vmem>>) attributes {dimension_semantics = [#tpu.dimension_semantics<parallel>], iteration_bounds = array<i64: 1>, scalar_prefetch = 0 : i64, scratch_operands = 0 : i64, tpu.core_type = #tpu.core_type<tc>, window_params = [{transform_indices = @transform_0, window_bounds = array<i64: 16, 32>}, {transform_indices = @transform_1, window_bounds = array<i64: 16, 32>}, {transform_indices = @transform_2, window_bounds = array<i64: 16, 32>}, {pipeline_mode = #tpu.pipeline_mode<synchronous>, transform_indices = @transform_3, window_bounds = array<i64: 32, 32>}, {pipeline_mode = #tpu.pipeline_mode<synchronous>, transform_indices = @transform_4, window_bounds = array<i64: 1, 32>}, {pipeline_mode = #tpu.pipeline_mode<synchronous>, transform_indices = @transform_5, window_bounds = array<i64: 32, 32>}, {pipeline_mode = #tpu.pipeline_mode<synchronous>, transform_indices = @transform_6, window_bounds = array<i64: 1, 32>}, {pipeline_mode = #tpu.pipeline_mode<synchronous>, transform_indices = @transform_7, window_bounds = array<i64: 32, 32>}, {pipeline_mode = #tpu.pipeline_mode<synchronous>, transform_indices = @transform_8, window_bounds = array<i64: 1, 32>}, {transform_indices = @transform_9, window_bounds = array<i64: 16, 32>}, {transform_indices = @transform_10, window_bounds = array<i64: 16, 32>}, {transform_indices = @transform_11, window_bounds = array<i64: 16, 32>}]} {
    %c0 = arith.constant 0 : index
    %c0_0 = arith.constant 0 : index
    %0 = vector.load %arg1[%c0, %c0_0] : memref<16x32xbf16, #tpu.memory_space<vmem>>, vector<16x32xbf16>
    %c0_1 = arith.constant 0 : index
    %c0_2 = arith.constant 0 : index
    %1 = vector.load %arg4[%c0_1, %c0_2] : memref<32x32xbf16, #tpu.memory_space<vmem>>, vector<32x32xbf16>
    %cst = arith.constant dense<0.000000e+00> : vector<16x32xf32>
    %2 = tpu.matmul %0, %1, %cst {dimension_numbers = #tpu.dot_dimension_numbers<[1], [0], [0], [1], [0, 0, 1, 1], [], []>} : vector<16x32xbf16>, vector<32x32xbf16>, vector<16x32xf32> -> vector<16x32xf32>
    %c0_3 = arith.constant 0 : index
    %c0_4 = arith.constant 0 : index
    %3 = vector.load %arg5[%c0_3, %c0_4] : memref<1x32xf32, #tpu.memory_space<vmem>>, vector<1x32xf32>
    %4 = vector.broadcast %3 : vector<1x32xf32> to vector<16x32xf32>
    %5 = arith.addf %2, %4 : vector<16x32xf32>
    %6 = arith.truncf %5 : vector<16x32xf32> to vector<16x32xbf16>
    %c0_5 = arith.constant 0 : index
    %c0_6 = arith.constant 0 : index
    %7 = vector.load %arg10[%c0_5, %c0_6] : memref<16x32xbf16, #tpu.memory_space<vmem>>, vector<16x32xbf16>
    tpu.vector_store %arg10[%c0_5, %c0_6], %6 {strides = array<i32>} : memref<16x32xbf16, #tpu.memory_space<vmem>>, vector<16x32xbf16>,
    %c0_7 = arith.constant 0 : index
    %c0_8 = arith.constant 0 : index
    %8 = vector.load %arg2[%c0_7, %c0_8] : memref<16x32xbf16, #tpu.memory_space<vmem>>, vector<16x32xbf16>
    %c0_9 = arith.constant 0 : index
    %c0_10 = arith.constant 0 : index
    %9 = vector.load %arg6[%c0_9, %c0_10] : memref<32x32xbf16, #tpu.memory_space<vmem>>, vector<32x32xbf16>
    %cst_11 = arith.constant dense<0.000000e+00> : vector<16x32xf32>
    %10 = tpu.matmul %8, %9, %cst_11 {dimension_numbers = #tpu.dot_dimension_numbers<[1], [0], [0], [1], [0, 0, 1, 1], [], []>} : vector<16x32xbf16>, vector<32x32xbf16>, vector<16x32xf32> -> vector<16x32xf32>
    %c0_12 = arith.constant 0 : index
    %c0_13 = arith.constant 0 : index
    %11 = vector.load %arg7[%c0_12, %c0_13] : memref<1x32xf32, #tpu.memory_space<vmem>>, vector<1x32xf32>
    %12 = vector.broadcast %11 : vector<1x32xf32> to vector<16x32xf32>
    %13 = arith.addf %10, %12 : vector<16x32xf32>
    %14 = arith.truncf %13 : vector<16x32xf32> to vector<16x32xbf16>
    %c0_14 = arith.constant 0 : index
    %c0_15 = arith.constant 0 : index
    %15 = vector.load %arg11[%c0_14, %c0_15] : memref<16x32xbf16, #tpu.memory_space<vmem>>, vector<16x32xbf16>
    tpu.vector_store %arg11[%c0_14, %c0_15], %14 {strides = array<i32>} : memref<16x32xbf16, #tpu.memory_space<vmem>>, vector<16x32xbf16>,
    %c0_16 = arith.constant 0 : index
    %c0_17 = arith.constant 0 : index
    %16 = vector.load %arg3[%c0_16, %c0_17] : memref<16x32xbf16, #tpu.memory_space<vmem>>, vector<16x32xbf16>
    %c0_18 = arith.constant 0 : index
    %c0_19 = arith.constant 0 : index
    %17 = vector.load %arg8[%c0_18, %c0_19] : memref<32x32xbf16, #tpu.memory_space<vmem>>, vector<32x32xbf16>
    %cst_20 = arith.constant dense<0.000000e+00> : vector<16x32xf32>
    %18 = tpu.matmul %16, %17, %cst_20 {dimension_numbers = #tpu.dot_dimension_numbers<[1], [0], [0], [1], [0, 0, 1, 1], [], []>} : vector<16x32xbf16>, vector<32x32xbf16>, vector<16x32xf32> -> vector<16x32xf32>
    %c0_21 = arith.constant 0 : index
    %c0_22 = arith.constant 0 : index
    %19 = vector.load %arg9[%c0_21, %c0_22] : memref<1x32xf32, #tpu.memory_space<vmem>>, vector<1x32xf32>
    %20 = vector.broadcast %19 : vector<1x32xf32> to vector<16x32xf32>
    %21 = arith.addf %18, %20 : vector<16x32xf32>
    %22 = arith.truncf %21 : vector<16x32xf32> to vector<16x32xbf16>
    %c0_23 = arith.constant 0 : index
    %c0_24 = arith.constant 0 : index
    %23 = vector.load %arg12[%c0_23, %c0_24] : memref<16x32xbf16, #tpu.memory_space<vmem>>, vector<16x32xbf16>
    tpu.vector_store %arg12[%c0_23, %c0_24], %22 {strides = array<i32>} : memref<16x32xbf16, #tpu.memory_space<vmem>>, vector<16x32xbf16>,
    return
  }
  func.func @transform_0(%arg0: i32) -> (i32, i32) {
    %c0_i32 = arith.constant 0 : i32
    %c0_i32_0 = arith.constant 0 : i32
    return %arg0, %c0_i32 : i32, i32
  }
  func.func @transform_1(%arg0: i32) -> (i32, i32) {
    %c0_i32 = arith.constant 0 : i32
    %c0_i32_0 = arith.constant 0 : i32
    return %arg0, %c0_i32 : i32, i32
  }
  func.func @transform_2(%arg0: i32) -> (i32, i32) {
    %c0_i32 = arith.constant 0 : i32
    %c0_i32_0 = arith.constant 0 : i32
    return %arg0, %c0_i32 : i32, i32
  }
  func.func @transform_3(%arg0: i32) -> (i32, i32) {
    %c0_i32 = arith.constant 0 : i32
    %c0_i32_0 = arith.constant 0 : i32
    %c0_i32_1 = arith.constant 0 : i32
    return %c0_i32, %c0_i32_0 : i32, i32
  }
  func.func @transform_4(%arg0: i32) -> (i32, i32) {
    %c0_i32 = arith.constant 0 : i32
    %c0_i32_0 = arith.constant 0 : i32
    %c0_i32_1 = arith.constant 0 : i32
    return %c0_i32, %c0_i32_0 : i32, i32
  }
  func.func @transform_5(%arg0: i32) -> (i32, i32) {
    %c0_i32 = arith.constant 0 : i32
    %c0_i32_0 = arith.constant 0 : i32
    %c0_i32_1 = arith.constant 0 : i32
    return %c0_i32, %c0_i32_0 : i32, i32
  }
  func.func @transform_6(%arg0: i32) -> (i32, i32) {
    %c0_i32 = arith.constant 0 : i32
    %c0_i32_0 = arith.constant 0 : i32
    %c0_i32_1 = arith.constant 0 : i32
    return %c0_i32, %c0_i32_0 : i32, i32
  }
  func.func @transform_7(%arg0: i32) -> (i32, i32) {
    %c0_i32 = arith.constant 0 : i32
    %c0_i32_0 = arith.constant 0 : i32
    %c0_i32_1 = arith.constant 0 : i32
    return %c0_i32, %c0_i32_0 : i32, i32
  }
  func.func @transform_8(%arg0: i32) -> (i32, i32) {
    %c0_i32 = arith.constant 0 : i32
    %c0_i32_0 = arith.constant 0 : i32
    %c0_i32_1 = arith.constant 0 : i32
    return %c0_i32, %c0_i32_0 : i32, i32
  }
  func.func @transform_9(%arg0: i32) -> (i32, i32) {
    %c0_i32 = arith.constant 0 : i32
    %c0_i32_0 = arith.constant 0 : i32
    return %arg0, %c0_i32 : i32, i32
  }
  func.func @transform_10(%arg0: i32) -> (i32, i32) {
    %c0_i32 = arith.constant 0 : i32
    %c0_i32_0 = arith.constant 0 : i32
    return %arg0, %c0_i32 : i32, i32
  }
  func.func @transform_11(%arg0: i32) -> (i32, i32) {
    %c0_i32 = arith.constant 0 : i32
    %c0_i32_0 = arith.constant 0 : i32
    return %arg0, %c0_i32 : i32, i32
  }
}

</mosaic_0001>

<llo_original>
// kernel: tpu_custom_call.1
$region0: #{tpu_custom_call.1}
  #allocation0 [shape = 'u32[]', space=smem, size = 0x4, offset = 0x4, fixed_abs, tag = 'smem constant byte address 0x4 - core index']
  #allocation1 [shape = 'u32[144,128]{1,0:T(1,128)}', space=vmem, size = 0x12000, scoped, tag = 'internal scratch']
  %s0 = inlined_call_operand.hbm [shape: bf16[16,32], index: 0, kind: input, shape index: {}]
  %s1 = inlined_call_operand.hbm [shape: bf16[16,32], index: 1, kind: input, shape index: {}]
  %s2 = inlined_call_operand.hbm [shape: bf16[16,32], index: 2, kind: input, shape index: {}]
  %s3 = inlined_call_operand.hbm [shape: bf16[32,32], index: 3, kind: input, shape index: {}]
  %s4 = inlined_call_operand.vmem [shape: f32[1,32], index: 4, kind: input, shape index: {}]
  %s5 = inlined_call_operand.hbm [shape: bf16[32,32], index: 5, kind: input, shape index: {}]
  %s6 = inlined_call_operand.vmem [shape: f32[1,32], index: 6, kind: input, shape index: {}]
  %s7 = inlined_call_operand.hbm [shape: bf16[32,32], index: 7, kind: input, shape index: {}]
  %s8 = inlined_call_operand.vmem [shape: f32[1,32], index: 8, kind: input, shape index: {}]
  %s9 = inlined_call_operand.hbm [shape: bf16[16,32], index: 9, kind: output, shape index: {0}]
  %s10 = inlined_call_operand.hbm [shape: bf16[16,32], index: 10, kind: output, shape index: {1}]
  %s11 = inlined_call_operand.hbm [shape: bf16[16,32], index: 11, kind: output, shape index: {2}]
  %12 = xla_tuple %s9, %s10, %s11
  %s13 = sld [smem:[#allocation0]]
  $region86: #{tpu_custom_call.1} parent=0
    _
  %s15 = ssub.s32 1, %s13
  %s16 = scalar_select 0, %s15, %s13
  $region1: #{tpu_custom_call.1} parent=0
    #allocation2 [shape = 'u8[4096]{0}', space=vmem, size = 0x1000, scoped, tag = 'input window, operand 0, single buffered']
    #allocation3 [shape = 's32[1]{0}', space=sflag, size = 0x4, scoped, tag = 'scoped memory for tpu_custom_call.1']
    #allocation4 [shape = 's32[1]{0}', space=sflag, size = 0x4, scoped, tag = 'scoped memory for tpu_custom_call.1']
    #allocation5 [shape = 'u8[4096]{0}', space=vmem, size = 0x1000, scoped, tag = 'input window, operand 1, single buffered']
    #allocation6 [shape = 's32[1]{0}', space=sflag, size = 0x4, scoped, tag = 'scoped memory for tpu_custom_call.1']
    #allocation7 [shape = 'u8[4096]{0}', space=vmem, size = 0x1000, scoped, tag = 'input window, operand 2, single buffered']
    #allocation8 [shape = 'u8[8192]{0}', space=vmem, size = 0x2000, scoped, tag = 'input window, operand 3, single buffered']
    #allocation9 [shape = 's32[1]{0}', space=sflag, size = 0x4, scoped, tag = 'scoped memory for tpu_custom_call.1']
    #allocation10 [shape = 'u8[8192]{0}', space=vmem, size = 0x2000, scoped, tag = 'input window, operand 5, single buffered']
    #allocation11 [shape = 'u8[8192]{0}', space=vmem, size = 0x2000, scoped, tag = 'input window, operand 7, single buffered']
    #allocation12 [shape = 's32[1]{0}', space=sflag, size = 0x4, scoped, tag = 'scoped memory for tpu_custom_call.1']
    #allocation13 [shape = 'u8[4096]{0}', space=vmem, size = 0x1000, scoped, tag = 'output window, operand 0, single buffered']
    #allocation14 [shape = 'u8[4096]{0}', space=vmem, size = 0x1000, scoped, tag = 'output window, operand 1, single buffered']
    #allocation15 [shape = 's32[1]{0}', space=sflag, size = 0x4, scoped, tag = 'scoped memory for tpu_custom_call.1']
    #allocation16 [shape = 'u8[4096]{0}', space=vmem, size = 0x1000, scoped, tag = 'output window, operand 2, single buffered']
    %17 = vsyncpa [#allocation3], 0
    %18 = vsyncpa [#allocation6], 0
    %19 = vsyncpa [#allocation9], 0
    %20 = vsyncpa [#allocation12], 0
    %21 = vsyncpa [#allocation4], 0
    %22 = vsyncpa [#allocation15], 0
    // Predicated region
    $region2: #{tpu_custom_call.1} parent=1 // pred_check
      _
    $region3: #{tpu_custom_call.1} parent=1 // pred_check_branch
      %24 = sbr.rel (0) target = $region5
    $region4: #{tpu_custom_call.1} parent=1 // pred_region
      %s26 = ssub.s32 128, 128
      %27 = vsyncadd [#allocation3], %s26
      %s28 = sshll.u32 [#allocation2], 4
      %s29 = int_to_ptr.vmem [resolvable:$true] %s28
      %34 = dma.hbm_to_vmem [thread:$0]  %s0, 128, %s29, [#allocation3], 64, 64, 4
    $region5: #{tpu_custom_call.1} parent=1 // pred_fallthru
      _
    // Predicated region
    $region6: #{tpu_custom_call.1} parent=1 // pred_check
      _
    $region7: #{tpu_custom_call.1} parent=1 // pred_check_branch
      %36 = sbr.rel (0) target = $region9
    $region8: #{tpu_custom_call.1} parent=1 // pred_region
      %s38 = ssub.s32 128, 128
      %39 = vsyncadd [#allocation6], %s38
      %s40 = sshll.u32 [#allocation5], 4
      %s41 = int_to_ptr.vmem [resolvable:$true] %s40
      %46 = dma.hbm_to_vmem [thread:$0]  %s1, 128, %s41, [#allocation6], 64, 64, 4
    $region9: #{tpu_custom_call.1} parent=1 // pred_fallthru
      _
    // Predicated region
    $region10: #{tpu_custom_call.1} parent=1 // pred_check
      _
    $region11: #{tpu_custom_call.1} parent=1 // pred_check_branch
      %48 = sbr.rel (0) target = $region13
    $region12: #{tpu_custom_call.1} parent=1 // pred_region
      %s50 = ssub.s32 128, 128
      %51 = vsyncadd [#allocation6], %s50
      %s52 = sshll.u32 [#allocation7], 4
      %s53 = int_to_ptr.vmem [resolvable:$true] %s52
      %58 = dma.hbm_to_vmem [thread:$0]  %s2, 128, %s53, [#allocation6], 64, 64, 4
    $region13: #{tpu_custom_call.1} parent=1 // pred_fallthru
      _
    // Predicated region
    $region14: #{tpu_custom_call.1} parent=1 // pred_check
      _
    $region15: #{tpu_custom_call.1} parent=1 // pred_check_branch
      %60 = sbr.rel (0) target = $region17
    $region16: #{tpu_custom_call.1} parent=1 // pred_region
      %s62 = ssub.s32 256, 256
      %63 = vsyncadd [#allocation9], %s62
      %s64 = sshll.u32 [#allocation8], 4
      %s65 = int_to_ptr.vmem [resolvable:$true] %s64
      %70 = dma.hbm_to_vmem [thread:$0]  %s3, 256, %s65, [#allocation9], 64, 64, 4
    $region17: #{tpu_custom_call.1} parent=1 // pred_fallthru
      _
    // Predicated region
    $region18: #{tpu_custom_call.1} parent=1 // pred_check
      _
    $region19: #{tpu_custom_call.1} parent=1 // pred_check_branch
      %72 = sbr.rel (0) target = $region21
    $region20: #{tpu_custom_call.1} parent=1 // pred_region
      _
    $region21: #{tpu_custom_call.1} parent=1 // pred_fallthru
      _
    // Predicated region
    $region22: #{tpu_custom_call.1} parent=1 // pred_check
      _
    $region23: #{tpu_custom_call.1} parent=1 // pred_check_branch
      %74 = sbr.rel (0) target = $region25
    $region24: #{tpu_custom_call.1} parent=1 // pred_region
      %s76 = ssub.s32 256, 256
      %77 = vsyncadd [#allocation9], %s76
      %s78 = sshll.u32 [#allocation10], 4
      %s79 = int_to_ptr.vmem [resolvable:$true] %s78
      %84 = dma.hbm_to_vmem [thread:$0]  %s5, 256, %s79, [#allocation9], 64, 64, 4
    $region25: #{tpu_custom_call.1} parent=1 // pred_fallthru
      _
    // Predicated region
    $region26: #{tpu_custom_call.1} parent=1 // pred_check
      _
    $region27: #{tpu_custom_call.1} parent=1 // pred_check_branch
      %86 = sbr.rel (0) target = $region29
    $region28: #{tpu_custom_call.1} parent=1 // pred_region
      _
    $region29: #{tpu_custom_call.1} parent=1 // pred_fallthru
      _
    // Predicated region
    $region30: #{tpu_custom_call.1} parent=1 // pred_check
      _
    $region31: #{tpu_custom_call.1} parent=1 // pred_check_branch
      %88 = sbr.rel (0) target = $region33
    $region32: #{tpu_custom_call.1} parent=1 // pred_region
      %s90 = ssub.s32 256, 256
      %91 = vsyncadd [#allocation12], %s90
      %s92 = sshll.u32 [#allocation11], 4
      %s93 = int_to_ptr.vmem [resolvable:$true] %s92
      %98 = dma.hbm_to_vmem [thread:$0]  %s7, 256, %s93, [#allocation12], 64, 64, 4
    $region33: #{tpu_custom_call.1} parent=1 // pred_fallthru
      _
    // Predicated region
    $region34: #{tpu_custom_call.1} parent=1 // pred_check
      _
    $region35: #{tpu_custom_call.1} parent=1 // pred_check_branch
      %100 = sbr.rel (0) target = $region37
    $region36: #{tpu_custom_call.1} parent=1 // pred_region
      _
    $region37: #{tpu_custom_call.1} parent=1 // pred_fallthru
      _
    // Predicated region
    $region38: #{tpu_custom_call.1} parent=1 // pred_check
      _
    $region39: #{tpu_custom_call.1} parent=1 // pred_check_branch
      %102 = sbr.rel (0) target = $region41
    $region40: #{tpu_custom_call.1} parent=1 // pred_region
      %103 = dma.done [#allocation3], 128
    $region41: #{tpu_custom_call.1} parent=1 // pred_fallthru
      _
    // Predicated region
    $region42: #{tpu_custom_call.1} parent=1 // pred_check
      _
    $region43: #{tpu_custom_call.1} parent=1 // pred_check_branch
      %105 = sbr.rel (0) target = $region45
    $region44: #{tpu_custom_call.1} parent=1 // pred_region
      %106 = dma.done [#allocation6], 128
    $region45: #{tpu_custom_call.1} parent=1 // pred_fallthru
      _
    // Predicated region
    $region46: #{tpu_custom_call.1} parent=1 // pred_check
      _
    $region47: #{tpu_custom_call.1} parent=1 // pred_check_branch
      %108 = sbr.rel (0) target = $region49
    $region48: #{tpu_custom_call.1} parent=1 // pred_region
      %109 = dma.done [#allocation6], 128
    $region49: #{tpu_custom_call.1} parent=1 // pred_fallthru
      _
    // Predicated region
    $region50: #{tpu_custom_call.1} parent=1 // pred_check
      _
    $region51: #{tpu_custom_call.1} parent=1 // pred_check_branch
      %111 = sbr.rel (0) target = $region53
    $region52: #{tpu_custom_call.1} parent=1 // pred_region
      %112 = dma.done [#allocation9], 256
    $region53: #{tpu_custom_call.1} parent=1 // pred_fallthru
      _
    // Predicated region
    $region54: #{tpu_custom_call.1} parent=1 // pred_check
      _
    $region55: #{tpu_custom_call.1} parent=1 // pred_check_branch
      %114 = sbr.rel (0) target = $region57
    $region56: #{tpu_custom_call.1} parent=1 // pred_region
      %115 = dma.done [#allocation9], 256
    $region57: #{tpu_custom_call.1} parent=1 // pred_fallthru
      _
    // Predicated region
    $region58: #{tpu_custom_call.1} parent=1 // pred_check
      _
    $region59: #{tpu_custom_call.1} parent=1 // pred_check_branch
      %117 = sbr.rel (0) target = $region61
    $region60: #{tpu_custom_call.1} parent=1 // pred_region
      %118 = dma.done [#allocation12], 256
    $region61: #{tpu_custom_call.1} parent=1 // pred_fallthru
      _
    %v120 = vld [vmem:[#allocation2] sm:$0xf]
    %v121 = vld [vmem:[#allocation2 + $0x4] sm:$0xf]
    %v122 = vld [vmem:[#allocation8] sm:$0xf]
    %v123 = vld [vmem:[#allocation8 + $0x4] sm:$0xf]
    %v124 = vld [vmem:[#allocation8 + $0x8] sm:$0xf]
    %v125 = vld [vmem:[#allocation8 + $0xc] sm:$0xf]
    %v126 = vld [vmem:[%s4] sm:$0x1]
    %v128 = vlaneseq
    %v129 = vshrl.u32 %v128, 7
    %v130 = vsub.s32 0, %v129
    %v131 = vrot.slane %v126, %v130
    %v135 = vunpack.c.l.b16 %v120
    %v136 = vunpack.c.l.b16 %v121
    %v137 = vpack.c.b16 %v136, %v135
    %v142 = vunpack.c.l.b16 %v122
    %v143 = vunpack.c.l.b16 %v123
    %v144 = vunpack.c.l.b16 %v124
    %v145 = vunpack.c.l.b16 %v125
    %v146 = vpack.c.b16 %v143, %v142
    %v147 = vpack.c.b16 %v145, %v144
    %vm150 = vcmask 261120
    %v152 = vsel %vm150, %v137, 0
    %154 = vmatprep.subr.bf16.mxu0 0
    %155 = vmatpush1.bf16.msra.mxu0 0
    %156 = vmatprep.subr.bf16.mxu0 0
    %157 = vmatpush1.bf16.msra.mxu0 0
    %158 = vmatprep.subr.bf16.mxu0 0
    %159 = vmatpush1.bf16.msra.mxu0 0
    %160 = vmatprep.subr.bf16.mxu0 0
    %161 = vmatpush1.bf16.msra.mxu0 0
    %162 = vmatprep.subr.bf16.mxu0 0
    %163 = vmatpush1.bf16.msra.mxu0 0
    %164 = vmatprep.subr.bf16.mxu0 0
    %165 = vmatpush1.bf16.msra.mxu0 0
    %166 = vmatprep.subr.bf16.mxu0 0
    %167 = vmatpush1.bf16.msra.mxu0 %v147
    %168 = vmatprep.subr.bf16.mxu0 0
    %169 = vmatpush1.bf16.msra.mxu0 %v146
    %170 = vmatprep.subr.bf16.mxu0 0
    %171 = vmatpush2.bf16.msra.mxu0 0
    %172 = vmatprep.subr.bf16.mxu0 0
    %173 = vmatpush2.bf16.msra.mxu0 0
    %174 = vmatprep.subr.bf16.mxu0 0
    %175 = vmatpush2.bf16.msra.mxu0 0
    %176 = vmatprep.subr.bf16.mxu0 0
    %177 = vmatpush2.bf16.msra.mxu0 0
    %178 = vmatprep.subr.bf16.mxu0 0
    %179 = vmatpush2.bf16.msra.mxu0 0
    %180 = vmatprep.subr.bf16.mxu0 0
    %181 = vmatpush2.bf16.msra.mxu0 0
    %182 = vmatprep.subr.bf16.mxu0 0
    %183 = vmatpush2.bf16.msra.mxu0 0
    %184 = vmatprep.subr.bf16.mxu0 0
    %185 = vmatpush2.bf16.msra.mxu0 0
    %186 = vmatprep.mubr.bf16.mxu0 0
    %187 = vmatmul.mubr.bf16.gmra.mxu0 %v152
    %v188 = vpop.f32.mrf.mxu0
    %v189 = vadd.f32 %v131, %v188
    %v190 = vpop.f32.mrf.mxu0
    %v191 = vpop.f32.mrf.mxu0
    %v192 = vadd.f32 %v131, %v191
    %v193 = vpop.f32.mrf.mxu0
    %194 = vdwg.mxu0
    %v195 = vpack.c.bf16 %v192, %v189
    %v197 = vunpack.c.l.b16 %v195
    %v198 = vunpack.c.h.b16 %v195
    %v199 = vpack.c.b16 %v197, %v197
    %v200 = vpack.c.b16 %v198, %v198
    %vm203 = vcmask 257024
    %204 = vst.msk [vmem:[#allocation13] sm:$0xf] %vm203, %v199
    %205 = vst.msk [vmem:[#allocation13 + $0x4] sm:$0xf] %vm203, %v200
    %v206 = vld [vmem:[#allocation5] sm:$0xf]
    %v207 = vld [vmem:[#allocation5 + $0x4] sm:$0xf]
    %v208 = vld [vmem:[#allocation10] sm:$0xf]
    %v209 = vld [vmem:[#allocation10 + $0x4] sm:$0xf]
    %v210 = vld [vmem:[#allocation10 + $0x8] sm:$0xf]
    %v211 = vld [vmem:[#allocation10 + $0xc] sm:$0xf]
    %v212 = vld [vmem:[%s6] sm:$0x1]
    %v214 = vlaneseq
    %v215 = vshrl.u32 %v214, 7
    %v216 = vsub.s32 0, %v215
    %v217 = vrot.slane %v212, %v216
    %v221 = vunpack.c.l.b16 %v206
    %v222 = vunpack.c.l.b16 %v207
    %v223 = vpack.c.b16 %v222, %v221
    %v228 = vunpack.c.l.b16 %v208
    %v229 = vunpack.c.l.b16 %v209
    %v230 = vunpack.c.l.b16 %v210
    %v231 = vunpack.c.l.b16 %v211
    %v232 = vpack.c.b16 %v229, %v228
    %v233 = vpack.c.b16 %v231, %v230
    %v237 = vsel %vm150, %v223, 0
    %239 = vmatprep.subr.bf16.mxu0 0
    %240 = vmatpush1.bf16.msra.mxu0 0
    %241 = vmatprep.subr.bf16.mxu0 0
    %242 = vmatpush1.bf16.msra.mxu0 0
    %243 = vmatprep.subr.bf16.mxu0 0
    %244 = vmatpush1.bf16.msra.mxu0 0
    %245 = vmatprep.subr.bf16.mxu0 0
    %246 = vmatpush1.bf16.msra.mxu0 0
    %247 = vmatprep.subr.bf16.mxu0 0
    %248 = vmatpush1.bf16.msra.mxu0 0
    %249 = vmatprep.subr.bf16.mxu0 0
    %250 = vmatpush1.bf16.msra.mxu0 0
    %251 = vmatprep.subr.bf16.mxu0 0
    %252 = vmatpush1.bf16.msra.mxu0 %v233
    %253 = vmatprep.subr.bf16.mxu0 0
    %254 = vmatpush1.bf16.msra.mxu0 %v232
    %255 = vmatprep.subr.bf16.mxu0 0
    %256 = vmatpush2.bf16.msra.mxu0 0
    %257 = vmatprep.subr.bf16.mxu0 0
    %258 = vmatpush2.bf16.msra.mxu0 0
    %259 = vmatprep.subr.bf16.mxu0 0
    %260 = vmatpush2.bf16.msra.mxu0 0
    %261 = vmatprep.subr.bf16.mxu0 0
    %262 = vmatpush2.bf16.msra.mxu0 0
    %263 = vmatprep.subr.bf16.mxu0 0
    %264 = vmatpush2.bf16.msra.mxu0 0
    %265 = vmatprep.subr.bf16.mxu0 0
    %266 = vmatpush2.bf16.msra.mxu0 0
    %267 = vmatprep.subr.bf16.mxu0 0
    %268 = vmatpush2.bf16.msra.mxu0 0
    %269 = vmatprep.subr.bf16.mxu0 0
    %270 = vmatpush2.bf16.msra.mxu0 0
    %271 = vmatprep.mubr.bf16.mxu0 0
    %272 = vmatmul.mubr.bf16.gmra.mxu0 %v237
    %v273 = vpop.f32.mrf.mxu0
    %v274 = vadd.f32 %v217, %v273
    %v275 = vpop.f32.mrf.mxu0
    %v276 = vpop.f32.mrf.mxu0
    %v277 = vadd.f32 %v217, %v276
    %v278 = vpop.f32.mrf.mxu0
    %279 = vdwg.mxu0
    %v280 = vpack.c.bf16 %v277, %v274
    %v282 = vunpack.c.l.b16 %v280
    %v283 = vunpack.c.h.b16 %v280
    %v284 = vpack.c.b16 %v282, %v282
    %v285 = vpack.c.b16 %v283, %v283
    %288 = vst.msk [vmem:[#allocation14] sm:$0xf] %vm203, %v284
    %289 = vst.msk [vmem:[#allocation14 + $0x4] sm:$0xf] %vm203, %v285
    %v290 = vld [vmem:[#allocation7] sm:$0xf]
    %v291 = vld [vmem:[#allocation7 + $0x4] sm:$0xf]
    %v292 = vld [vmem:[#allocation11] sm:$0xf]
    %v293 = vld [vmem:[#allocation11 + $0x4] sm:$0xf]
    %v294 = vld [vmem:[#allocation11 + $0x8] sm:$0xf]
    %v295 = vld [vmem:[#allocation11 + $0xc] sm:$0xf]
    %v296 = vld [vmem:[%s8] sm:$0x1]
    %v298 = vlaneseq
    %v299 = vshrl.u32 %v298, 7
    %v300 = vsub.s32 0, %v299
    %v301 = vrot.slane %v296, %v300
    %v305 = vunpack.c.l.b16 %v290
    %v306 = vunpack.c.l.b16 %v291
    %v307 = vpack.c.b16 %v306, %v305
    %v312 = vunpack.c.l.b16 %v292
    %v313 = vunpack.c.l.b16 %v293
    %v314 = vunpack.c.l.b16 %v294
    %v315 = vunpack.c.l.b16 %v295
    %v316 = vpack.c.b16 %v313, %v312
    %v317 = vpack.c.b16 %v315, %v314
    %v321 = vsel %vm150, %v307, 0
    %323 = vmatprep.subr.bf16.mxu0 0
    %324 = vmatpush1.bf16.msra.mxu0 0
    %325 = vmatprep.subr.bf16.mxu0 0
    %326 = vmatpush1.bf16.msra.mxu0 0
    %327 = vmatprep.subr.bf16.mxu0 0
    %328 = vmatpush1.bf16.msra.mxu0 0
    %329 = vmatprep.subr.bf16.mxu0 0
    %330 = vmatpush1.bf16.msra.mxu0 0
    %331 = vmatprep.subr.bf16.mxu0 0
    %332 = vmatpush1.bf16.msra.mxu0 0
    %333 = vmatprep.subr.bf16.mxu0 0
    %334 = vmatpush1.bf16.msra.mxu0 0
    %335 = vmatprep.subr.bf16.mxu0 0
    %336 = vmatpush1.bf16.msra.mxu0 %v317
    %337 = vmatprep.subr.bf16.mxu0 0
    %338 = vmatpush1.bf16.msra.mxu0 %v316
    %339 = vmatprep.subr.bf16.mxu0 0
    %340 = vmatpush2.bf16.msra.mxu0 0
    %341 = vmatprep.subr.bf16.mxu0 0
    %342 = vmatpush2.bf16.msra.mxu0 0
    %343 = vmatprep.subr.bf16.mxu0 0
    %344 = vmatpush2.bf16.msra.mxu0 0
    %345 = vmatprep.subr.bf16.mxu0 0
    %346 = vmatpush2.bf16.msra.mxu0 0
    %347 = vmatprep.subr.bf16.mxu0 0
    %348 = vmatpush2.bf16.msra.mxu0 0
    %349 = vmatprep.subr.bf16.mxu0 0
    %350 = vmatpush2.bf16.msra.mxu0 0
    %351 = vmatprep.subr.bf16.mxu0 0
    %352 = vmatpush2.bf16.msra.mxu0 0
    %353 = vmatprep.subr.bf16.mxu0 0
    %354 = vmatpush2.bf16.msra.mxu0 0
    %355 = vmatprep.mubr.bf16.mxu0 0
    %356 = vmatmul.mubr.bf16.gmra.mxu0 %v321
    %v357 = vpop.f32.mrf.mxu0
    %v358 = vadd.f32 %v301, %v357
    %v359 = vpop.f32.mrf.mxu0
    %v360 = vpop.f32.mrf.mxu0
    %v361 = vadd.f32 %v301, %v360
    %v362 = vpop.f32.mrf.mxu0
    %363 = vdwg.mxu0
    %v364 = vpack.c.bf16 %v361, %v358
    %v366 = vunpack.c.l.b16 %v364
    %v367 = vunpack.c.h.b16 %v364
    %v368 = vpack.c.b16 %v366, %v366
    %v369 = vpack.c.b16 %v367, %v367
    %372 = vst.msk [vmem:[#allocation16] sm:$0xf] %vm203, %v368
    %373 = vst.msk [vmem:[#allocation16 + $0x4] sm:$0xf] %vm203, %v369
    // Predicated region
    $region62: #{tpu_custom_call.1} parent=1 // pred_check
      _
    $region63: #{tpu_custom_call.1} parent=1 // pred_check_branch
      %375 = sbr.rel (0) target = $region65
    $region64: #{tpu_custom_call.1} parent=1 // pred_region
      %s377 = ssub.s32 128, 128
      %378 = vsyncadd [#allocation4], %s377
      %s379 = sshll.u32 [#allocation13], 4
      %s380 = int_to_ptr.vmem [resolvable:$true] %s379
      %385 = dma.vmem_to_hbm [thread:$0]  %s380, 128, %s9, [#allocation4], 64, 64, 4
    $region65: #{tpu_custom_call.1} parent=1 // pred_fallthru
      _
    // Predicated region
    $region66: #{tpu_custom_call.1} parent=1 // pred_check
      _
    $region67: #{tpu_custom_call.1} parent=1 // pred_check_branch
      %387 = sbr.rel (0) target = $region69
    $region68: #{tpu_custom_call.1} parent=1 // pred_region
      %s389 = ssub.s32 128, 128
      %390 = vsyncadd [#allocation15], %s389
      %s391 = sshll.u32 [#allocation14], 4
      %s392 = int_to_ptr.vmem [resolvable:$true] %s391
      %397 = dma.vmem_to_hbm [thread:$0]  %s392, 128, %s10, [#allocation15], 64, 64, 4
    $region69: #{tpu_custom_call.1} parent=1 // pred_fallthru
      _
    // Predicated region
    $region70: #{tpu_custom_call.1} parent=1 // pred_check
      _
    $region71: #{tpu_custom_call.1} parent=1 // pred_check_branch
      %399 = sbr.rel (0) target = $region73
    $region72: #{tpu_custom_call.1} parent=1 // pred_region
      %s401 = ssub.s32 128, 128
      %402 = vsyncadd [#allocation15], %s401
      %s403 = sshll.u32 [#allocation16], 4
      %s404 = int_to_ptr.vmem [resolvable:$true] %s403
      %409 = dma.vmem_to_hbm [thread:$0]  %s404, 128, %s11, [#allocation15], 64, 64, 4
    $region73: #{tpu_custom_call.1} parent=1 // pred_fallthru
      _
    // Predicated region
    $region74: #{tpu_custom_call.1} parent=1 // pred_check
      _
    $region75: #{tpu_custom_call.1} parent=1 // pred_check_branch
      %411 = sbr.rel (0) target = $region77
    $region76: #{tpu_custom_call.1} parent=1 // pred_region
      %412 = dma.done [#allocation4], 128
    $region77: #{tpu_custom_call.1} parent=1 // pred_fallthru
      _
    // Predicated region
    $region78: #{tpu_custom_call.1} parent=1 // pred_check
      _
    $region79: #{tpu_custom_call.1} parent=1 // pred_check_branch
      %414 = sbr.rel (0) target = $region81
    $region80: #{tpu_custom_call.1} parent=1 // pred_region
      %415 = dma.done [#allocation15], 128
    $region81: #{tpu_custom_call.1} parent=1 // pred_fallthru
      _
    // Predicated region
    $region82: #{tpu_custom_call.1} parent=1 // pred_check
      _
    $region83: #{tpu_custom_call.1} parent=1 // pred_check_branch
      %417 = sbr.rel (0) target = $region85
    $region84: #{tpu_custom_call.1} parent=1 // pred_region
      %418 = dma.done [#allocation15], 128
    $region85: #{tpu_custom_call.1} parent=1 // pred_fallthru
      _
    %419 = vsyncpa [#allocation3], 1
    %420 = vsyncpa [#allocation6], 1
    %421 = vsyncpa [#allocation9], 1
    %422 = vsyncpa [#allocation12], 1
    %423 = vsyncpa [#allocation4], 1
    %424 = vsyncpa [#allocation15], 1

</llo_original>
